<compile_context>
chip_gen: v7x
topology: tpu7x:2x2x1
jax: 0.10.0
libtpu: 0.0.40
codegen_flags: <defaults>
</compile_context>

<pallas_src>
import functools

import jax
import jax.numpy as jnp
import numpy as np
from jax.experimental import pallas as pl
from jax.experimental.pallas import tpu as pltpu

_LANE = 128
_SUBLANE = 8
_M_ALIGN = 256          # multiple of both 128 (v5e MXU) and 256 (v6e/v7x MXU)
_MAX_TILE_N = 2048


def _round_up(x, m):
    return ((x + m - 1) // m) * m


# -----------------------------------------------------------------------------
# Device-aware VMEM budget
# -----------------------------------------------------------------------------
@functools.lru_cache(maxsize=1)
def _vmem_budget_and_limit():
    """(pipeline-buffer budget, scoped vmem_limit_bytes) for the local TPU gen.

    v5e/v6e: 128 MiB physical VMEM -> ~64 MiB buffer budget, 96 MiB scoped limit.
    v7x:      64 MiB physical VMEM -> ~32 MiB buffer budget, 48 MiB scoped limit.
    Falls back to the conservative (v7x-sized) numbers if the query fails.
    """
    phys = 64 * 1024 * 1024
    try:
        info = pltpu.get_tpu_info()
        phys = int(getattr(info, "vmem_capacity_bytes", phys)) or phys
    except Exception:
        pass
    budget = phys // 2
    limit = min(phys - phys // 4, budget + budget // 2)
    return budget, int(limit)


def _spec(block_shape, index_map, buffer_count=None):
    """BlockSpec, optionally single-buffered (for resident, constant-index blocks)."""
    if buffer_count is not None:
        try:
            return pl.BlockSpec(block_shape, index_map,
                                pipeline_mode=pl.Buffered(buffer_count))
        except Exception:  # older jax without pipeline_mode -> default buffering
            pass
    return pl.BlockSpec(block_shape, index_map)


# -----------------------------------------------------------------------------
# Kernels
# -----------------------------------------------------------------------------
def _dense_kernel(x_ref, wt_ref, b_ref, o_ref):
    # x_ref : (tile_n, K)        node-feature tile (stored dtype, cast on VPU)
    # wt_ref: (K, tile_co)       pre-transposed weight tile (compute dtype)
    # b_ref : (1, tile_co)       bias row (f32)
    # o_ref : (tile_n, tile_co)  output tile
    x = x_ref[...].astype(wt_ref.dtype)          # cast hides under the MXU
    acc = jnp.dot(x, wt_ref[...], preferred_element_type=jnp.float32)
    o_ref[...] = (acc + b_ref[...]).astype(o_ref.dtype)


def _dense_kernel_ktiled(x_ref, wt_ref, b_ref, o_ref, acc_ref):
    # K-reduction variant: grid axis 2 ("arbitrary", innermost) walks K chunks.
    k = pl.program_id(2)

    @pl.when(k == 0)
    def _():
        acc_ref[...] = jnp.zeros_like(acc_ref)

    x = x_ref[...].astype(wt_ref.dtype)
    acc_ref[...] += jnp.dot(x, wt_ref[...], preferred_element_type=jnp.float32)

    @pl.when(k == pl.num_programs(2) - 1)
    def _():
        o_ref[...] = (acc_ref[...] + b_ref[...]).astype(o_ref.dtype)


# -----------------------------------------------------------------------------
# Tiling plan
# -----------------------------------------------------------------------------
def _plan_feature_tiles(c_in, c_out_p, x_isz, w_isz, o_isz, budget):
    """Pick (tile_co, tile_k). tile_k is None => no K-reduction grid axis.

    A) full weight resident, single-buffered (grid_co == 1)  -> W DMA'd once.
    B) tile c_out only if A does not fit                     -> bounded W blocks.
    C) also tile K for very large c_in                       -> bounded x/W blocks.
    """
    rows = _M_ALIGN  # keep room for at least one 256-row activation tile

    if c_in * c_out_p * w_isz + rows * 2 * (c_in * x_isz + c_out_p * o_isz) <= budget:
        return c_out_p, None

    for tile_co in (1024, 512, 256, 128):
        if c_out_p % tile_co:
            continue
        if 2 * c_in * tile_co * w_isz + rows * 2 * (c_in * x_isz + tile_co * o_isz) <= budget:
            return tile_co, None

    for tile_k in (2048, 1024, 512, 256, 128):
        for tile_co in (1024, 512, 256, 128):
            if c_out_p % tile_co:
                continue
            need = (2 * tile_k * tile_co * w_isz
                    + rows * (2 * tile_k * x_isz + 2 * tile_co * o_isz + tile_co * 4))
            if need <= budget:
                return tile_co, tile_k

    return 128, 128  # degenerate fallback; tile_n will shrink below 256


def _choose_tile_n(n, c_in_k, tile_co, tile_k, grid_co, x_isz, w_isz, o_isz, budget):
    if tile_k is None:
        w_res = (1 if grid_co == 1 else 2) * c_in_k * tile_co * w_isz
        per_row = 2 * (c_in_k * x_isz + tile_co * o_isz)
    else:
        w_res = 2 * tile_k * tile_co * w_isz
        per_row = 2 * tile_k * x_isz + 2 * tile_co * o_isz + tile_co * 4

    n8 = _round_up(max(n, 1), _SUBLANE)
    avail = max(budget - w_res, per_row * _SUBLANE)
    tile_n = int(avail // per_row)

    if tile_n >= n8:
        tile_n = n8                                     # one row tile, minimal padding
    elif tile_n >= _M_ALIGN:
        tile_n = min((tile_n // _M_ALIGN) * _M_ALIGN, _MAX_TILE_N)
    else:
        tile_n = max((tile_n // _SUBLANE) * _SUBLANE, _SUBLANE)

    # Prefer a tile that divides n exactly (avoids the per-call row-pad copy),
    # as long as it stays >= half of the budget-optimal tile.
    if n > tile_n and n % tile_n != 0:
        for t in range(tile_n, max(tile_n // 2, _SUBLANE) - 1, -_SUBLANE):
            if n % t == 0:
                tile_n = t
                break

    # >= 2 grid steps when possible so v7x's two TensorCores can share the
    # (parallel) row axis; keep the halves balanced and 256-aligned when large.
    grid_n = (n8 + tile_n - 1) // tile_n
    if grid_n * grid_co == 1 and n8 >= 2 * _M_ALIGN:
        align = _M_ALIGN if n8 >= 4 * _M_ALIGN else _SUBLANE
        tile_n = _round_up((n8 + 1) // 2, align)

    return tile_n


# -----------------------------------------------------------------------------
# Parameter prep (one-time; no per-call transpose / pad of the weight)
# -----------------------------------------------------------------------------
def prepare_dense_params(weight, bias, compute_dtype=None, *, _force_plan=None):
    """weight: (c_out, c_in) PyTorch nn.Linear layout; bias: (c_out,).

    Returns params with a lane-dense, pre-transposed weight.  The K (c_in) axis
    is only zero-padded when the layer needs the K-tiled reduction path.
    """
    weight = jnp.asarray(weight)
    bias = jnp.asarray(bias)
    c_out, c_in = weight.shape
    c_out_p = _round_up(c_out, _LANE)
    w_dtype = jnp.dtype(compute_dtype) if compute_dtype is not None else weight.dtype

    budget, _ = _vmem_budget_and_limit()
    if _force_plan is not None:
        tile_co, tile_k = _force_plan
    else:
        # Plan with f32-sized activations/outputs (worst case).
        tile_co, tile_k = _plan_feature_tiles(c_in, c_out_p, 4, w_dtype.itemsize, 4, budget)

    c_in_k = c_in if tile_k is None else _round_up(c_in, tile_k)

    wt = jnp.zeros((c_in_k, c_out_p), w_dtype)
    wt = wt.at[:c_in, :c_out].set(weight.T.astype(w_dtype))
    b = jnp.zeros((1, c_out_p), jnp.float32)
    b = b.at[0, :c_out].set(bias.astype(jnp.float32))

    return {"wt": wt, "b": b, "c_in": c_in, "c_out": c_out,
            "tile_co": tile_co, "tile_k": tile_k}


# -----------------------------------------------------------------------------
# Forward pass (DenseLayer.forward)
# -----------------------------------------------------------------------------
def dense_layer(x, params, *, force_pallas=False, min_pallas_elems=1 << 14):
    """y = node_feats @ W^T + b via the Pallas kernel (plain XLA for tiny sizes)."""
    wt, b = params["wt"], params["b"]
    c_in, c_out = params["c_in"], params["c_out"]
    tile_co, tile_k = params["tile_co"], params["tile_k"]
    c_in_k, c_out_p = wt.shape

    assert x.shape[-1] == c_in
    lead_shape = x.shape[:-1]
    if x.ndim != 2:
        x = x.reshape(-1, c_in)
    n = x.shape[0]
    out_dtype = x.dtype

    def _finish(y2d):
        return y2d.reshape(lead_shape + (c_out,))

    # Tiny problems: per-grid-step overhead + padding dominate -> plain XLA.
    if not force_pallas and n * c_in < min_pallas_elems:
        y = jnp.dot(x.astype(wt.dtype), wt[:c_in],
                    preferred_element_type=jnp.float32) + b
        return _finish(y[:, :c_out].astype(out_dtype))

    x_isz = jnp.dtype(x.dtype).itemsize
    w_isz = jnp.dtype(wt.dtype).itemsize
    o_isz = jnp.dtype(out_dtype).itemsize
    budget, vmem_limit = _vmem_budget_and_limit()
    grid_co = c_out_p // tile_co
    tile_n = _choose_tile_n(n, c_in_k, tile_co, tile_k, grid_co,
                            x_isz, w_isz, o_isz, budget)
    n_p = _round_up(n, tile_n)
    grid_n = n_p // tile_n

    # Per-call padding limited to what is strictly required: rows only when
    # n % tile_n != 0, K columns only on the (rare) K-tiled path.  No dtype
    # cast here -- the kernel casts the x tile on the VPU under the MXU.
    if n_p != n or c_in_k != c_in:
        x_p = jnp.zeros((n_p, c_in_k), x.dtype)
        x_p = x_p.at[:n, :c_in].set(x)
    else:
        x_p = x

    cost = pl.CostEstimate(
        flops=2 * n_p * c_in_k * c_out_p,
        transcendentals=0,
        bytes_accessed=(n_p * c_in_k * x_isz + c_in_k * c_out_p * w_isz
                        + n_p * c_out_p * o_isz),
    )
    compiler_params = pltpu.CompilerParams(
        dimension_semantics=(("parallel", "parallel") if tile_k is None
                             else ("parallel", "parallel", "arbitrary")),
        vmem_limit_bytes=vmem_limit,
    )
    out_shape = jax.ShapeDtypeStruct((n_p, c_out_p), out_dtype)

    if tile_k is None:
        single_w = grid_co == 1          # weight block index constant -> resident
        resident = 1 if single_w else None
        # If c_out must be tiled, pick the loop nest that minimises redundant
        # HBM traffic: default re-streams W grid_n times, swapped re-streams x
        # grid_co times.
        w_bytes = c_in_k * c_out_p * w_isz
        x_bytes = n_p * c_in_k * x_isz
        rows_inner = (not single_w) and (grid_co - 1) * x_bytes < (grid_n - 1) * w_bytes

        if rows_inner:
            grid = (grid_co, grid_n)     # W fetched once; x re-streamed grid_co times
            in_specs = [
                pl.BlockSpec((tile_n, c_in_k), lambda j, i: (i, 0)),
                pl.BlockSpec((c_in_k, tile_co), lambda j, i: (0, j)),
                pl.BlockSpec((1, tile_co), lambda j, i: (0, j)),
            ]
            out_specs = pl.BlockSpec((tile_n, tile_co), lambda j, i: (i, j))
        else:
            grid = (grid_n, grid_co)     # x fetched once; W resident when grid_co == 1
            in_specs = [
                pl.BlockSpec((tile_n, c_in_k), lambda i, j: (i, 0)),
                _spec((c_in_k, tile_co), lambda i, j: (0, j), resident),
                _spec((1, tile_co), lambda i, j: (0, j), resident),
            ]
            out_specs = pl.BlockSpec((tile_n, tile_co), lambda i, j: (i, j))

        out = pl.pallas_call(
            _dense_kernel,
            out_shape=out_shape,
            grid_spec=pltpu.PrefetchScalarGridSpec(
                num_scalar_prefetch=0, grid=grid,
                in_specs=in_specs, out_specs=out_specs),
            compiler_params=compiler_params,
            cost_estimate=cost,
        )(x_p, wt, b)
    else:
        grid_k = c_in_k // tile_k
        out = pl.pallas_call(
            _dense_kernel_ktiled,
            out_shape=out_shape,
            grid_spec=pltpu.PrefetchScalarGridSpec(
                num_scalar_prefetch=0,
                grid=(grid_n, grid_co, grid_k),
                in_specs=[
                    pl.BlockSpec((tile_n, tile_k), lambda i, j, k: (i, k)),
                    pl.BlockSpec((tile_k, tile_co), lambda i, j, k: (k, j)),
                    pl.BlockSpec((1, tile_co), lambda i, j, k: (0, j)),
                ],
                out_specs=pl.BlockSpec((tile_n, tile_co), lambda i, j, k: (i, j)),
                scratch_shapes=[pltpu.VMEM((tile_n, tile_co), jnp.float32)],
            ),
            compiler_params=compiler_params,
            cost_estimate=cost,
        )(x_p, wt, b)

    if n_p != n or c_out_p != c_out:
        out = out[:n, :c_out]
    return _finish(out)


# -----------------------------------------------------------------------------
# Parameter init (matches DenseLayer.__init__)
# -----------------------------------------------------------------------------
def init_dense_params(key, c_in, c_out, zero_init=False):
    if zero_init:
        w = jnp.zeros((c_out, c_in), jnp.float32)
    else:
        bound = float(np.sqrt(6.0 / (c_in + c_out)))
        w = jax.random.uniform(key, (c_out, c_in), jnp.float32,
                               minval=-bound, maxval=bound)
    b = jnp.zeros((c_out,), jnp.float32)
    return w, b


# -----------------------------------------------------------------------------
# Demo / correctness check
# -----------------------------------------------------------------------------
if __name__ == "__main__":
    key = jax.random.PRNGKey(0)
    k_x, k_w, k_x2, k_w2 = jax.random.split(key, 4)

    # Small, deliberately non-aligned shapes (resident-weight path).
    N, C_IN, C_OUT = 300, 96, 200
    x = jax.random.normal(k_x, (N, C_IN), jnp.float32)
    weight, bias = init_dense_params(k_w, C_IN, C_OUT)
    y_ref = x @ weight.T + bias

    params = prepare_dense_params(weight, bias)
    y = jax.block_until_ready(dense_layer(x, params, force_pallas=True))
    np.testing.assert_allclose(np.asarray(y), np.asarray(y_ref),
                               rtol=1e-5, atol=1e-5)

    # bf16 compute (f32 MXU accumulation); x stays f32 in HBM, cast in-kernel.
    params_bf16 = prepare_dense_params(weight, bias, compute_dtype=jnp.bfloat16)
    y_bf16 = jax.block_until_ready(dense_layer(x, params_bf16, force_pallas=True))
    np.testing.assert_allclose(np.asarray(y_bf16), np.asarray(y_ref),
                               rtol=2e-2, atol=2e-2)

    # Exercise the c_out-tiled + K-tiled reduction path at a small size.
    N2, C_IN2, C_OUT2 = 260, 256, 200
    x2 = jax.random.normal(k_x2, (N2, C_IN2), jnp.float32)
    w2, b2 = init_dense_params(k_w2, C_IN2, C_OUT2)
    y2_ref = x2 @ w2.T + b2
    params_k = prepare_dense_params(w2, b2, _force_plan=(128, 128))
    y2 = jax.block_until_ready(dense_layer(x2, params_k, force_pallas=True))
    np.testing.assert_allclose(np.asarray(y2), np.asarray(y2_ref),
                               rtol=1e-5, atol=1e-5)

    print("KERNEL_OK")
</pallas_src>

<mosaic_0001>
module attributes {stable_mosaic.version = 11 : i64} {
  func.func @_dense_kernel(%arg0: i32, %arg1: i32, %arg2: memref<304x96xf32, #tpu.memory_space<vmem>>, %arg3: memref<96x256xf32, #tpu.memory_space<vmem>>, %arg4: memref<1x256xf32, #tpu.memory_space<vmem>>, %arg5: memref<304x256xf32, #tpu.memory_space<vmem>>) attributes {dimension_semantics = [#tpu.dimension_semantics<parallel>, #tpu.dimension_semantics<parallel>], iteration_bounds = array<i64: 1, 1>, scalar_prefetch = 0 : i64, scratch_operands = 0 : i64, tpu.core_type = #tpu.core_type<tc>, window_params = [{transform_indices = @transform_0, window_bounds = array<i64: 304, 96>}, {pipeline_mode = #tpu.pipeline_mode<synchronous>, transform_indices = @transform_1, window_bounds = array<i64: 96, 256>}, {pipeline_mode = #tpu.pipeline_mode<synchronous>, transform_indices = @transform_2, window_bounds = array<i64: 1, 256>}, {transform_indices = @transform_3, window_bounds = array<i64: 304, 256>}]} {
    %c0 = arith.constant 0 : index
    %c0_0 = arith.constant 0 : index
    %0 = vector.load %arg2[%c0, %c0_0] : memref<304x96xf32, #tpu.memory_space<vmem>>, vector<304x96xf32>
    %c0_1 = arith.constant 0 : index
    %c0_2 = arith.constant 0 : index
    %1 = vector.load %arg3[%c0_1, %c0_2] : memref<96x256xf32, #tpu.memory_space<vmem>>, vector<96x256xf32>
    %cst = arith.constant dense<0.000000e+00> : vector<304x256xf32>
    %2 = tpu.matmul %0, %1, %cst {dimension_numbers = #tpu.dot_dimension_numbers<[1], [0], [0], [1], [0, 0, 1, 1], [], []>} : vector<304x96xf32>, vector<96x256xf32>, vector<304x256xf32> -> vector<304x256xf32>
    %c0_3 = arith.constant 0 : index
    %c0_4 = arith.constant 0 : index
    %3 = vector.load %arg4[%c0_3, %c0_4] : memref<1x256xf32, #tpu.memory_space<vmem>>, vector<1x256xf32>
    %4 = vector.broadcast %3 : vector<1x256xf32> to vector<304x256xf32>
    %5 = arith.addf %2, %4 : vector<304x256xf32>
    %c0_5 = arith.constant 0 : index
    %c0_6 = arith.constant 0 : index
    %6 = vector.load %arg5[%c0_5, %c0_6] : memref<304x256xf32, #tpu.memory_space<vmem>>, vector<304x256xf32>
    tpu.vector_store %arg5[%c0_5, %c0_6], %5 {strides = array<i32>} : memref<304x256xf32, #tpu.memory_space<vmem>>, vector<304x256xf32>,
    return
  }
  func.func @transform_0(%arg0: i32, %arg1: i32) -> (i32, i32) {
    %c0_i32 = arith.constant 0 : i32
    %c0_i32_0 = arith.constant 0 : i32
    return %arg0, %c0_i32 : i32, i32
  }
  func.func @transform_1(%arg0: i32, %arg1: i32) -> (i32, i32) {
    %c0_i32 = arith.constant 0 : i32
    %c0_i32_0 = arith.constant 0 : i32
    return %c0_i32, %arg1 : i32, i32
  }
  func.func @transform_2(%arg0: i32, %arg1: i32) -> (i32, i32) {
    %c0_i32 = arith.constant 0 : i32
    %c0_i32_0 = arith.constant 0 : i32
    return %c0_i32, %arg1 : i32, i32
  }
  func.func @transform_3(%arg0: i32, %arg1: i32) -> (i32, i32) {
    %c0_i32 = arith.constant 0 : i32
    return %arg0, %arg1 : i32, i32
  }
}

</mosaic_0001>

<llo_original>
// kernel: tpu_custom_call.1
$region0: #{tpu_custom_call.1}
  #allocation0 [shape = 'u32[]', space=smem, size = 0x4, offset = 0x4, fixed_abs, tag = 'smem constant byte address 0x4 - core index']
  #allocation1 [shape = 'u32[144,128]{1,0:T(1,128)}', space=vmem, size = 0x12000, scoped, tag = 'internal scratch']
  %s0 = inlined_call_operand.vmem [shape: f32[304,96], index: 0, kind: input, shape index: {}]
  %s1 = inlined_call_operand.vmem [shape: f32[96,256], index: 1, kind: input, shape index: {}]
  %s2 = inlined_call_operand.vmem [shape: f32[1,256], index: 2, kind: input, shape index: {}]
  %s3 = inlined_call_operand.hbm [shape: f32[304,256], index: 3, kind: output, shape index: {}]
  %s4 = sld [smem:[#allocation0]]
  $region22: #{tpu_custom_call.1} parent=0
    _
  %s6 = ssub.s32 1, %s4
  %s7 = scalar_select 0, %s6, %s4
  $region1: #{tpu_custom_call.1} parent=0
    #allocation2 [shape = 'u8[311296]{0}', space=vmem, size = 0x4c000, scoped, tag = 'output window, operand 0, single buffered']
    #allocation3 [shape = 's32[1]{0}', space=sflag, size = 0x4, scoped, tag = 'scoped memory for tpu_custom_call.1']
    %8 = vsyncpa [#allocation3], 0
    // Predicated region
    $region2: #{tpu_custom_call.1} parent=1 // pred_check
      _
    $region3: #{tpu_custom_call.1} parent=1 // pred_check_branch
      %10 = sbr.rel (0) target = $region5
    $region4: #{tpu_custom_call.1} parent=1 // pred_region
      _
    $region5: #{tpu_custom_call.1} parent=1 // pred_fallthru
      _
    // Predicated region
    $region6: #{tpu_custom_call.1} parent=1 // pred_check
      _
    $region7: #{tpu_custom_call.1} parent=1 // pred_check_branch
      %12 = sbr.rel (0) target = $region9
    $region8: #{tpu_custom_call.1} parent=1 // pred_region
      _
    $region9: #{tpu_custom_call.1} parent=1 // pred_fallthru
      _
    // Predicated region
    $region10: #{tpu_custom_call.1} parent=1 // pred_check
      _
    $region11: #{tpu_custom_call.1} parent=1 // pred_check_branch
      %14 = sbr.rel (0) target = $region13
    $region12: #{tpu_custom_call.1} parent=1 // pred_region
      _
    $region13: #{tpu_custom_call.1} parent=1 // pred_fallthru
      _
    %v15 = vld [vmem:[%s0] sm:$0xff]
    %v16 = vld [vmem:[%s0 + $0x8] sm:$0xff]
    %v17 = vld [vmem:[%s0 + $0x10] sm:$0xff]
    %v18 = vld [vmem:[%s0 + $0x18] sm:$0xff]
    %v19 = vld [vmem:[%s0 + $0x20] sm:$0xff]
    %v20 = vld [vmem:[%s0 + $0x28] sm:$0xff]
    %v21 = vld [vmem:[%s0 + $0x30] sm:$0xff]
    %v22 = vld [vmem:[%s0 + $0x38] sm:$0xff]
    %v23 = vld [vmem:[%s0 + $0x40] sm:$0xff]
    %v24 = vld [vmem:[%s0 + $0x48] sm:$0xff]
    %v25 = vld [vmem:[%s0 + $0x50] sm:$0xff]
    %v26 = vld [vmem:[%s0 + $0x58] sm:$0xff]
    %v27 = vld [vmem:[%s0 + $0x60] sm:$0xff]
    %v28 = vld [vmem:[%s0 + $0x68] sm:$0xff]
    %v29 = vld [vmem:[%s0 + $0x70] sm:$0xff]
    %v30 = vld [vmem:[%s0 + $0x78] sm:$0xff]
    %v31 = vld [vmem:[%s0 + $0x80] sm:$0xff]
    %v32 = vld [vmem:[%s0 + $0x88] sm:$0xff]
    %v33 = vld [vmem:[%s0 + $0x90] sm:$0xff]
    %v34 = vld [vmem:[%s0 + $0x98] sm:$0xff]
    %v35 = vld [vmem:[%s0 + $0xa0] sm:$0xff]
    %v36 = vld [vmem:[%s0 + $0xa8] sm:$0xff]
    %v37 = vld [vmem:[%s0 + $0xb0] sm:$0xff]
    %v38 = vld [vmem:[%s0 + $0xb8] sm:$0xff]
    %v39 = vld [vmem:[%s0 + $0xc0] sm:$0xff]
    %v40 = vld [vmem:[%s0 + $0xc8] sm:$0xff]
    %v41 = vld [vmem:[%s0 + $0xd0] sm:$0xff]
    %v42 = vld [vmem:[%s0 + $0xd8] sm:$0xff]
    %v43 = vld [vmem:[%s0 + $0xe0] sm:$0xff]
    %v44 = vld [vmem:[%s0 + $0xe8] sm:$0xff]
    %v45 = vld [vmem:[%s0 + $0xf0] sm:$0xff]
    %v46 = vld [vmem:[%s0 + $0xf8] sm:$0xff]
    %v47 = vld [vmem:[%s0 + $0x100] sm:$0xff]
    %v48 = vld [vmem:[%s0 + $0x108] sm:$0xff]
    %v49 = vld [vmem:[%s0 + $0x110] sm:$0xff]
    %v50 = vld [vmem:[%s0 + $0x118] sm:$0xff]
    %v51 = vld [vmem:[%s0 + $0x120] sm:$0xff]
    %v52 = vld [vmem:[%s0 + $0x128] sm:$0xff]
    %v53 = vld [vmem:[%s1] sm:$0xff]
    %v54 = vld [vmem:[%s1 + $0x8] sm:$0xff]
    %v55 = vld [vmem:[%s1 + $0x10] sm:$0xff]
    %v56 = vld [vmem:[%s1 + $0x18] sm:$0xff]
    %v57 = vld [vmem:[%s1 + $0x20] sm:$0xff]
    %v58 = vld [vmem:[%s1 + $0x28] sm:$0xff]
    %v59 = vld [vmem:[%s1 + $0x30] sm:$0xff]
    %v60 = vld [vmem:[%s1 + $0x38] sm:$0xff]
    %v61 = vld [vmem:[%s1 + $0x40] sm:$0xff]
    %v62 = vld [vmem:[%s1 + $0x48] sm:$0xff]
    %v63 = vld [vmem:[%s1 + $0x50] sm:$0xff]
    %v64 = vld [vmem:[%s1 + $0x58] sm:$0xff]
    %v65 = vld [vmem:[%s1 + $0x60] sm:$0xff]
    %v66 = vld [vmem:[%s1 + $0x68] sm:$0xff]
    %v67 = vld [vmem:[%s1 + $0x70] sm:$0xff]
    %v68 = vld [vmem:[%s1 + $0x78] sm:$0xff]
    %v69 = vld [vmem:[%s1 + $0x80] sm:$0xff]
    %v70 = vld [vmem:[%s1 + $0x88] sm:$0xff]
    %v71 = vld [vmem:[%s1 + $0x90] sm:$0xff]
    %v72 = vld [vmem:[%s1 + $0x98] sm:$0xff]
    %v73 = vld [vmem:[%s1 + $0xa0] sm:$0xff]
    %v74 = vld [vmem:[%s1 + $0xa8] sm:$0xff]
    %v75 = vld [vmem:[%s1 + $0xb0] sm:$0xff]
    %v76 = vld [vmem:[%s1 + $0xb8] sm:$0xff]
    %v77 = vld [vmem:[%s2] sm:$0x3]
    %v79 = vlaneseq
    %v80 = vshrl.u32 %v79, 7
    %v81 = vsub.s32 0, %v80
    %v82 = vrot.slane %v77, %v81
    %v83 = vlaneseq
    %v84 = vshrl.u32 %v83, 7
    %v85 = vsub.s32 1, %v84
    %v86 = vrot.slane %v77, %v85
    %vm89 = vcmask 785408
    %v91 = vsel %vm89, %v15, 0
    %v94 = vsel %vm89, %v16, 0
    %v97 = vsel %vm89, %v17, 0
    %v100 = vsel %vm89, %v18, 0
    %v103 = vsel %vm89, %v19, 0
    %v106 = vsel %vm89, %v20, 0
    %v109 = vsel %vm89, %v21, 0
    %v112 = vsel %vm89, %v22, 0
    %v115 = vsel %vm89, %v23, 0
    %v118 = vsel %vm89, %v24, 0
    %v121 = vsel %vm89, %v25, 0
    %v124 = vsel %vm89, %v26, 0
    %v127 = vsel %vm89, %v27, 0
    %v130 = vsel %vm89, %v28, 0
    %v133 = vsel %vm89, %v29, 0
    %v136 = vsel %vm89, %v30, 0
    %v139 = vsel %vm89, %v31, 0
    %v142 = vsel %vm89, %v32, 0
    %v145 = vsel %vm89, %v33, 0
    %v148 = vsel %vm89, %v34, 0
    %v151 = vsel %vm89, %v35, 0
    %v154 = vsel %vm89, %v36, 0
    %v157 = vsel %vm89, %v37, 0
    %v160 = vsel %vm89, %v38, 0
    %v163 = vsel %vm89, %v39, 0
    %v166 = vsel %vm89, %v40, 0
    %v169 = vsel %vm89, %v41, 0
    %v172 = vsel %vm89, %v42, 0
    %v175 = vsel %vm89, %v43, 0
    %v178 = vsel %vm89, %v44, 0
    %v181 = vsel %vm89, %v45, 0
    %v184 = vsel %vm89, %v46, 0
    %v187 = vsel %vm89, %v47, 0
    %v190 = vsel %vm89, %v48, 0
    %v193 = vsel %vm89, %v49, 0
    %v196 = vsel %vm89, %v50, 0
    %v199 = vsel %vm89, %v51, 0
    %v202 = vsel %vm89, %v52, 0
    %204 = vmatprep.subr.mxu0 %v54
    %205 = vmatpush1.msra.mxu0 %v53
    %206 = vmatprep.subr.mxu0 %v56
    %207 = vmatpush1.msra.mxu0 %v55
    %208 = vmatprep.subr.mxu0 %v58
    %209 = vmatpush1.msra.mxu0 %v57
    %210 = vmatprep.subr.mxu0 %v60
    %211 = vmatpush1.msra.mxu0 %v59
    %212 = vmatprep.subr.mxu0 %v62
    %213 = vmatpush1.msra.mxu0 %v61
    %214 = vmatprep.subr.mxu0 %v64
    %215 = vmatpush1.msra.mxu0 %v63
    %216 = vmatprep.subr.mxu0 %v66
    %217 = vmatpush1.msra.mxu0 %v65
    %218 = vmatprep.subr.mxu0 %v68
    %219 = vmatpush1.msra.mxu0 %v67
    %220 = vmatprep.subr.mxu0 %v70
    %221 = vmatpush1.msra.mxu0 %v69
    %222 = vmatprep.subr.mxu0 %v72
    %223 = vmatpush1.msra.mxu0 %v71
    %224 = vmatprep.subr.mxu0 %v74
    %225 = vmatpush1.msra.mxu0 %v73
    %226 = vmatprep.subr.mxu0 %v76
    %227 = vmatpush1.msra.mxu0 %v75
    %228 = vmatprep.subr.mxu0 0.0
    %229 = vmatpush1.msra.mxu0 0.0
    %230 = vmatprep.subr.mxu0 0.0
    %231 = vmatpush1.msra.mxu0 0.0
    %232 = vmatprep.subr.mxu0 0.0
    %233 = vmatpush1.msra.mxu0 0.0
    %234 = vmatprep.subr.mxu0 0.0
    %235 = vmatpush1.msra.mxu0 0.0
    %236 = vmatprep.subr.mxu0 0.0
    %237 = vmatpush1.msra.mxu0 0.0
    %238 = vmatprep.subr.mxu0 0.0
    %239 = vmatpush1.msra.mxu0 0.0
    %240 = vmatprep.subr.mxu0 0.0
    %241 = vmatpush1.msra.mxu0 0.0
    %242 = vmatprep.subr.mxu0 0.0
    %243 = vmatpush1.msra.mxu0 0.0
    %244 = vmatprep.subr.mxu0 0.0
    %245 = vmatpush1.msra.mxu0 0.0
    %246 = vmatprep.subr.mxu0 0.0
    %247 = vmatpush1.msra.mxu0 0.0
    %248 = vmatprep.subr.mxu0 0.0
    %249 = vmatpush1.msra.mxu0 0.0
    %250 = vmatprep.subr.mxu0 0.0
    %251 = vmatpush1.msra.mxu0 0.0
    %252 = vmatprep.subr.mxu0 0.0
    %253 = vmatpush1.msra.mxu0 0.0
    %254 = vmatprep.subr.mxu0 0.0
    %255 = vmatpush1.msra.mxu0 0.0
    %256 = vmatprep.subr.mxu0 0.0
    %257 = vmatpush1.msra.mxu0 0.0
    %258 = vmatprep.subr.mxu0 0.0
    %259 = vmatpush1.msra.mxu0 0.0
    %260 = vmatprep.subr.mxu0 0.0
    %261 = vmatpush1.msra.mxu0 0.0
    %262 = vmatprep.subr.mxu0 0.0
    %263 = vmatpush1.msra.mxu0 0.0
    %264 = vmatprep.subr.mxu0 0.0
    %265 = vmatpush1.msra.mxu0 0.0
    %266 = vmatprep.subr.mxu0 0.0
    %267 = vmatpush1.msra.mxu0 0.0
    %268 = vmatprep.mubr.f32.mxu0 0.0
    %269 = vmatmul.mubr.f32.gmra.mrb[0].mxu0 %v91
    %v270 = vpop.f32.mrb[0].mxu0
    %v271 = vadd.f32 %v82, %v270
    %v272 = vpop.f32.mrb[0].mxu0
    %v273 = vadd.f32 %v86, %v272
    %274 = vmatprep.mubr.f32.mxu0 0.0
    %275 = vmatmul.mubr.f32.gmra.mrb[0].mxu0 %v94
    %v276 = vpop.f32.mrb[0].mxu0
    %v277 = vadd.f32 %v82, %v276
    %v278 = vpop.f32.mrb[0].mxu0
    %v279 = vadd.f32 %v86, %v278
    %280 = vmatprep.mubr.f32.mxu0 0.0
    %281 = vmatmul.mubr.f32.gmra.mrb[0].mxu0 %v97
    %v282 = vpop.f32.mrb[0].mxu0
    %v283 = vadd.f32 %v82, %v282
    %v284 = vpop.f32.mrb[0].mxu0
    %v285 = vadd.f32 %v86, %v284
    %286 = vmatprep.mubr.f32.mxu0 0.0
    %287 = vmatmul.mubr.f32.gmra.mrb[0].mxu0 %v100
    %v288 = vpop.f32.mrb[0].mxu0
    %v289 = vadd.f32 %v82, %v288
    %v290 = vpop.f32.mrb[0].mxu0
    %v291 = vadd.f32 %v86, %v290
    %292 = vmatprep.mubr.f32.mxu0 0.0
    %293 = vmatmul.mubr.f32.gmra.mrb[0].mxu0 %v103
    %v294 = vpop.f32.mrb[0].mxu0
    %v295 = vadd.f32 %v82, %v294
    %v296 = vpop.f32.mrb[0].mxu0
    %v297 = vadd.f32 %v86, %v296
    %298 = vmatprep.mubr.f32.mxu0 0.0
    %299 = vmatmul.mubr.f32.gmra.mrb[0].mxu0 %v106
    %v300 = vpop.f32.mrb[0].mxu0
    %v301 = vadd.f32 %v82, %v300
    %v302 = vpop.f32.mrb[0].mxu0
    %v303 = vadd.f32 %v86, %v302
    %304 = vmatprep.mubr.f32.mxu0 0.0
    %305 = vmatmul.mubr.f32.gmra.mrb[0].mxu0 %v109
    %v306 = vpop.f32.mrb[0].mxu0
    %v307 = vadd.f32 %v82, %v306
    %v308 = vpop.f32.mrb[0].mxu0
    %v309 = vadd.f32 %v86, %v308
    %310 = vmatprep.mubr.f32.mxu0 0.0
    %311 = vmatmul.mubr.f32.gmra.mrb[0].mxu0 %v112
    %v312 = vpop.f32.mrb[0].mxu0
    %v313 = vadd.f32 %v82, %v312
    %v314 = vpop.f32.mrb[0].mxu0
    %v315 = vadd.f32 %v86, %v314
    %316 = vmatprep.mubr.f32.mxu0 0.0
    %317 = vmatmul.mubr.f32.gmra.mrb[0].mxu0 %v115
    %v318 = vpop.f32.mrb[0].mxu0
    %v319 = vadd.f32 %v82, %v318
    %v320 = vpop.f32.mrb[0].mxu0
    %v321 = vadd.f32 %v86, %v320
    %322 = vmatprep.mubr.f32.mxu0 0.0
    %323 = vmatmul.mubr.f32.gmra.mrb[0].mxu0 %v118
    %v324 = vpop.f32.mrb[0].mxu0
    %v325 = vadd.f32 %v82, %v324
    %v326 = vpop.f32.mrb[0].mxu0
    %v327 = vadd.f32 %v86, %v326
    %328 = vmatprep.mubr.f32.mxu0 0.0
    %329 = vmatmul.mubr.f32.gmra.mrb[0].mxu0 %v121
    %v330 = vpop.f32.mrb[0].mxu0
    %v331 = vadd.f32 %v82, %v330
    %v332 = vpop.f32.mrb[0].mxu0
    %v333 = vadd.f32 %v86, %v332
    %334 = vmatprep.mubr.f32.mxu0 0.0
    %335 = vmatmul.mubr.f32.gmra.mrb[0].mxu0 %v124
    %v336 = vpop.f32.mrb[0].mxu0
    %v337 = vadd.f32 %v82, %v336
    %v338 = vpop.f32.mrb[0].mxu0
    %v339 = vadd.f32 %v86, %v338
    %340 = vmatprep.mubr.f32.mxu0 0.0
    %341 = vmatmul.mubr.f32.gmra.mrb[0].mxu0 %v127
    %v342 = vpop.f32.mrb[0].mxu0
    %v343 = vadd.f32 %v82, %v342
    %v344 = vpop.f32.mrb[0].mxu0
    %v345 = vadd.f32 %v86, %v344
    %346 = vmatprep.mubr.f32.mxu0 0.0
    %347 = vmatmul.mubr.f32.gmra.mrb[0].mxu0 %v130
    %v348 = vpop.f32.mrb[0].mxu0
    %v349 = vadd.f32 %v82, %v348
    %v350 = vpop.f32.mrb[0].mxu0
    %v351 = vadd.f32 %v86, %v350
    %352 = vmatprep.mubr.f32.mxu0 0.0
    %353 = vmatmul.mubr.f32.gmra.mrb[0].mxu0 %v133
    %v354 = vpop.f32.mrb[0].mxu0
    %v355 = vadd.f32 %v82, %v354
    %v356 = vpop.f32.mrb[0].mxu0
    %v357 = vadd.f32 %v86, %v356
    %358 = vmatprep.mubr.f32.mxu0 0.0
    %359 = vmatmul.mubr.f32.gmra.mrb[0].mxu0 %v136
    %v360 = vpop.f32.mrb[0].mxu0
    %v361 = vadd.f32 %v82, %v360
    %v362 = vpop.f32.mrb[0].mxu0
    %v363 = vadd.f32 %v86, %v362
    %364 = vmatprep.mubr.f32.mxu0 0.0
    %365 = vmatmul.mubr.f32.gmra.mrb[0].mxu0 %v139
    %v366 = vpop.f32.mrb[0].mxu0
    %v367 = vadd.f32 %v82, %v366
    %v368 = vpop.f32.mrb[0].mxu0
    %v369 = vadd.f32 %v86, %v368
    %370 = vmatprep.mubr.f32.mxu0 0.0
    %371 = vmatmul.mubr.f32.gmra.mrb[0].mxu0 %v142
    %v372 = vpop.f32.mrb[0].mxu0
    %v373 = vadd.f32 %v82, %v372
    %v374 = vpop.f32.mrb[0].mxu0
    %v375 = vadd.f32 %v86, %v374
    %376 = vmatprep.mubr.f32.mxu0 0.0
    %377 = vmatmul.mubr.f32.gmra.mrb[0].mxu0 %v145
    %v378 = vpop.f32.mrb[0].mxu0
    %v379 = vadd.f32 %v82, %v378
    %v380 = vpop.f32.mrb[0].mxu0
    %v381 = vadd.f32 %v86, %v380
    %382 = vmatprep.mubr.f32.mxu0 0.0
    %383 = vmatmul.mubr.f32.gmra.mrb[0].mxu0 %v148
    %v384 = vpop.f32.mrb[0].mxu0
    %v385 = vadd.f32 %v82, %v384
    %v386 = vpop.f32.mrb[0].mxu0
    %v387 = vadd.f32 %v86, %v386
    %388 = vmatprep.mubr.f32.mxu0 0.0
    %389 = vmatmul.mubr.f32.gmra.mrb[0].mxu0 %v151
    %v390 = vpop.f32.mrb[0].mxu0
    %v391 = vadd.f32 %v82, %v390
    %v392 = vpop.f32.mrb[0].mxu0
    %v393 = vadd.f32 %v86, %v392
    %394 = vmatprep.mubr.f32.mxu0 0.0
    %395 = vmatmul.mubr.f32.gmra.mrb[0].mxu0 %v154
    %v396 = vpop.f32.mrb[0].mxu0
    %v397 = vadd.f32 %v82, %v396
    %v398 = vpop.f32.mrb[0].mxu0
    %v399 = vadd.f32 %v86, %v398
    %400 = vmatprep.mubr.f32.mxu0 0.0
    %401 = vmatmul.mubr.f32.gmra.mrb[0].mxu0 %v157
    %v402 = vpop.f32.mrb[0].mxu0
    %v403 = vadd.f32 %v82, %v402
    %v404 = vpop.f32.mrb[0].mxu0
    %v405 = vadd.f32 %v86, %v404
    %406 = vmatprep.mubr.f32.mxu0 0.0
    %407 = vmatmul.mubr.f32.gmra.mrb[0].mxu0 %v160
    %v408 = vpop.f32.mrb[0].mxu0
    %v409 = vadd.f32 %v82, %v408
    %v410 = vpop.f32.mrb[0].mxu0
    %v411 = vadd.f32 %v86, %v410
    %412 = vmatprep.mubr.f32.mxu0 0.0
    %413 = vmatmul.mubr.f32.gmra.mrb[0].mxu0 %v163
    %v414 = vpop.f32.mrb[0].mxu0
    %v415 = vadd.f32 %v82, %v414
    %v416 = vpop.f32.mrb[0].mxu0
    %v417 = vadd.f32 %v86, %v416
    %418 = vmatprep.mubr.f32.mxu0 0.0
    %419 = vmatmul.mubr.f32.gmra.mrb[0].mxu0 %v166
    %v420 = vpop.f32.mrb[0].mxu0
    %v421 = vadd.f32 %v82, %v420
    %v422 = vpop.f32.mrb[0].mxu0
    %v423 = vadd.f32 %v86, %v422
    %424 = vmatprep.mubr.f32.mxu0 0.0
    %425 = vmatmul.mubr.f32.gmra.mrb[0].mxu0 %v169
    %v426 = vpop.f32.mrb[0].mxu0
    %v427 = vadd.f32 %v82, %v426
    %v428 = vpop.f32.mrb[0].mxu0
    %v429 = vadd.f32 %v86, %v428
    %430 = vmatprep.mubr.f32.mxu0 0.0
    %431 = vmatmul.mubr.f32.gmra.mrb[0].mxu0 %v172
    %v432 = vpop.f32.mrb[0].mxu0
    %v433 = vadd.f32 %v82, %v432
    %v434 = vpop.f32.mrb[0].mxu0
    %v435 = vadd.f32 %v86, %v434
    %436 = vmatprep.mubr.f32.mxu0 0.0
    %437 = vmatmul.mubr.f32.gmra.mrb[0].mxu0 %v175
    %v438 = vpop.f32.mrb[0].mxu0
    %v439 = vadd.f32 %v82, %v438
    %v440 = vpop.f32.mrb[0].mxu0
    %v441 = vadd.f32 %v86, %v440
    %442 = vmatprep.mubr.f32.mxu0 0.0
    %443 = vmatmul.mubr.f32.gmra.mrb[0].mxu0 %v178
    %v444 = vpop.f32.mrb[0].mxu0
    %v445 = vadd.f32 %v82, %v444
    %v446 = vpop.f32.mrb[0].mxu0
    %v447 = vadd.f32 %v86, %v446
    %448 = vmatprep.mubr.f32.mxu0 0.0
    %449 = vmatmul.mubr.f32.gmra.mrb[0].mxu0 %v181
    %v450 = vpop.f32.mrb[0].mxu0
    %v451 = vadd.f32 %v82, %v450
    %v452 = vpop.f32.mrb[0].mxu0
    %v453 = vadd.f32 %v86, %v452
    %454 = vmatprep.mubr.f32.mxu0 0.0
    %455 = vmatmul.mubr.f32.gmra.mrb[0].mxu0 %v184
    %v456 = vpop.f32.mrb[0].mxu0
    %v457 = vadd.f32 %v82, %v456
    %v458 = vpop.f32.mrb[0].mxu0
    %v459 = vadd.f32 %v86, %v458
    %460 = vmatprep.mubr.f32.mxu0 0.0
    %461 = vmatmul.mubr.f32.gmra.mrb[0].mxu0 %v187
    %v462 = vpop.f32.mrb[0].mxu0
    %v463 = vadd.f32 %v82, %v462
    %v464 = vpop.f32.mrb[0].mxu0
    %v465 = vadd.f32 %v86, %v464
    %466 = vmatprep.mubr.f32.mxu0 0.0
    %467 = vmatmul.mubr.f32.gmra.mrb[0].mxu0 %v190
    %v468 = vpop.f32.mrb[0].mxu0
    %v469 = vadd.f32 %v82, %v468
    %v470 = vpop.f32.mrb[0].mxu0
    %v471 = vadd.f32 %v86, %v470
    %472 = vmatprep.mubr.f32.mxu0 0.0
    %473 = vmatmul.mubr.f32.gmra.mrb[0].mxu0 %v193
    %v474 = vpop.f32.mrb[0].mxu0
    %v475 = vadd.f32 %v82, %v474
    %v476 = vpop.f32.mrb[0].mxu0
    %v477 = vadd.f32 %v86, %v476
    %478 = vmatprep.mubr.f32.mxu0 0.0
    %479 = vmatmul.mubr.f32.gmra.mrb[0].mxu0 %v196
    %v480 = vpop.f32.mrb[0].mxu0
    %v481 = vadd.f32 %v82, %v480
    %v482 = vpop.f32.mrb[0].mxu0
    %v483 = vadd.f32 %v86, %v482
    %484 = vmatprep.mubr.f32.mxu0 0.0
    %485 = vmatmul.mubr.f32.gmra.mrb[0].mxu0 %v199
    %v486 = vpop.f32.mrb[0].mxu0
    %v487 = vadd.f32 %v82, %v486
    %v488 = vpop.f32.mrb[0].mxu0
    %v489 = vadd.f32 %v86, %v488
    %490 = vmatprep.mubr.f32.mxu0 0.0
    %491 = vmatmul.mubr.f32.gmra.mrb[0].mxu0 %v202
    %v492 = vpop.f32.mrb[0].mxu0
    %v493 = vadd.f32 %v82, %v492
    %v494 = vpop.f32.mrb[0].mxu0
    %v495 = vadd.f32 %v86, %v494
    %496 = vdwg.mxu0
    %497 = vst [vmem:[#allocation2] sm:$0xff] %v271
    %498 = vst [vmem:[#allocation2 + $0x8] sm:$0xff] %v273
    %499 = vst [vmem:[#allocation2 + $0x10] sm:$0xff] %v277
    %500 = vst [vmem:[#allocation2 + $0x18] sm:$0xff] %v279
    %501 = vst [vmem:[#allocation2 + $0x20] sm:$0xff] %v283
    %502 = vst [vmem:[#allocation2 + $0x28] sm:$0xff] %v285
    %503 = vst [vmem:[#allocation2 + $0x30] sm:$0xff] %v289
    %504 = vst [vmem:[#allocation2 + $0x38] sm:$0xff] %v291
    %505 = vst [vmem:[#allocation2 + $0x40] sm:$0xff] %v295
    %506 = vst [vmem:[#allocation2 + $0x48] sm:$0xff] %v297
    %507 = vst [vmem:[#allocation2 + $0x50] sm:$0xff] %v301
    %508 = vst [vmem:[#allocation2 + $0x58] sm:$0xff] %v303
    %509 = vst [vmem:[#allocation2 + $0x60] sm:$0xff] %v307
    %510 = vst [vmem:[#allocation2 + $0x68] sm:$0xff] %v309
    %511 = vst [vmem:[#allocation2 + $0x70] sm:$0xff] %v313
    %512 = vst [vmem:[#allocation2 + $0x78] sm:$0xff] %v315
    %513 = vst [vmem:[#allocation2 + $0x80] sm:$0xff] %v319
    %514 = vst [vmem:[#allocation2 + $0x88] sm:$0xff] %v321
    %515 = vst [vmem:[#allocation2 + $0x90] sm:$0xff] %v325
    %516 = vst [vmem:[#allocation2 + $0x98] sm:$0xff] %v327
    %517 = vst [vmem:[#allocation2 + $0xa0] sm:$0xff] %v331
    %518 = vst [vmem:[#allocation2 + $0xa8] sm:$0xff] %v333
    %519 = vst [vmem:[#allocation2 + $0xb0] sm:$0xff] %v337
    %520 = vst [vmem:[#allocation2 + $0xb8] sm:$0xff] %v339
    %521 = vst [vmem:[#allocation2 + $0xc0] sm:$0xff] %v343
    %522 = vst [vmem:[#allocation2 + $0xc8] sm:$0xff] %v345
    %523 = vst [vmem:[#allocation2 + $0xd0] sm:$0xff] %v349
    %524 = vst [vmem:[#allocation2 + $0xd8] sm:$0xff] %v351
    %525 = vst [vmem:[#allocation2 + $0xe0] sm:$0xff] %v355
    %526 = vst [vmem:[#allocation2 + $0xe8] sm:$0xff] %v357
    %527 = vst [vmem:[#allocation2 + $0xf0] sm:$0xff] %v361
    %528 = vst [vmem:[#allocation2 + $0xf8] sm:$0xff] %v363
    %529 = vst [vmem:[#allocation2 + $0x100] sm:$0xff] %v367
    %530 = vst [vmem:[#allocation2 + $0x108] sm:$0xff] %v369
    %531 = vst [vmem:[#allocation2 + $0x110] sm:$0xff] %v373
    %532 = vst [vmem:[#allocation2 + $0x118] sm:$0xff] %v375
    %533 = vst [vmem:[#allocation2 + $0x120] sm:$0xff] %v379
    %534 = vst [vmem:[#allocation2 + $0x128] sm:$0xff] %v381
    %535 = vst [vmem:[#allocation2 + $0x130] sm:$0xff] %v385
    %536 = vst [vmem:[#allocation2 + $0x138] sm:$0xff] %v387
    %537 = vst [vmem:[#allocation2 + $0x140] sm:$0xff] %v391
    %538 = vst [vmem:[#allocation2 + $0x148] sm:$0xff] %v393
    %539 = vst [vmem:[#allocation2 + $0x150] sm:$0xff] %v397
    %540 = vst [vmem:[#allocation2 + $0x158] sm:$0xff] %v399
    %541 = vst [vmem:[#allocation2 + $0x160] sm:$0xff] %v403
    %542 = vst [vmem:[#allocation2 + $0x168] sm:$0xff] %v405
    %543 = vst [vmem:[#allocation2 + $0x170] sm:$0xff] %v409
    %544 = vst [vmem:[#allocation2 + $0x178] sm:$0xff] %v411
    %545 = vst [vmem:[#allocation2 + $0x180] sm:$0xff] %v415
    %546 = vst [vmem:[#allocation2 + $0x188] sm:$0xff] %v417
    %547 = vst [vmem:[#allocation2 + $0x190] sm:$0xff] %v421
    %548 = vst [vmem:[#allocation2 + $0x198] sm:$0xff] %v423
    %549 = vst [vmem:[#allocation2 + $0x1a0] sm:$0xff] %v427
    %550 = vst [vmem:[#allocation2 + $0x1a8] sm:$0xff] %v429
    %551 = vst [vmem:[#allocation2 + $0x1b0] sm:$0xff] %v433
    %552 = vst [vmem:[#allocation2 + $0x1b8] sm:$0xff] %v435
    %553 = vst [vmem:[#allocation2 + $0x1c0] sm:$0xff] %v439
    %554 = vst [vmem:[#allocation2 + $0x1c8] sm:$0xff] %v441
    %555 = vst [vmem:[#allocation2 + $0x1d0] sm:$0xff] %v445
    %556 = vst [vmem:[#allocation2 + $0x1d8] sm:$0xff] %v447
    %557 = vst [vmem:[#allocation2 + $0x1e0] sm:$0xff] %v451
    %558 = vst [vmem:[#allocation2 + $0x1e8] sm:$0xff] %v453
    %559 = vst [vmem:[#allocation2 + $0x1f0] sm:$0xff] %v457
    %560 = vst [vmem:[#allocation2 + $0x1f8] sm:$0xff] %v459
    %561 = vst [vmem:[#allocation2 + $0x200] sm:$0xff] %v463
    %562 = vst [vmem:[#allocation2 + $0x208] sm:$0xff] %v465
    %563 = vst [vmem:[#allocation2 + $0x210] sm:$0xff] %v469
    %564 = vst [vmem:[#allocation2 + $0x218] sm:$0xff] %v471
    %565 = vst [vmem:[#allocation2 + $0x220] sm:$0xff] %v475
    %566 = vst [vmem:[#allocation2 + $0x228] sm:$0xff] %v477
    %567 = vst [vmem:[#allocation2 + $0x230] sm:$0xff] %v481
    %568 = vst [vmem:[#allocation2 + $0x238] sm:$0xff] %v483
    %569 = vst [vmem:[#allocation2 + $0x240] sm:$0xff] %v487
    %570 = vst [vmem:[#allocation2 + $0x248] sm:$0xff] %v489
    %571 = vst [vmem:[#allocation2 + $0x250] sm:$0xff] %v493
    %572 = vst [vmem:[#allocation2 + $0x258] sm:$0xff] %v495
    // Predicated region
    $region14: #{tpu_custom_call.1} parent=1 // pred_check
      _
    $region15: #{tpu_custom_call.1} parent=1 // pred_check_branch
      %574 = sbr.rel (0) target = $region17
    $region16: #{tpu_custom_call.1} parent=1 // pred_region
      %s576 = ssub.s32 9728, 9728
      %577 = vsyncadd [#allocation3], %s576
      %s578 = sshll.u32 [#allocation2], 4
      %s579 = int_to_ptr.vmem [resolvable:$true] %s578
      %584 = dma.vmem_to_hbm [thread:$0]  %s579, 9728, %s3, [#allocation3], 256, 256, 16
    $region17: #{tpu_custom_call.1} parent=1 // pred_fallthru
      _
    // Predicated region
    $region18: #{tpu_custom_call.1} parent=1 // pred_check
      _
    $region19: #{tpu_custom_call.1} parent=1 // pred_check_branch
      %586 = sbr.rel (0) target = $region21
    $region20: #{tpu_custom_call.1} parent=1 // pred_region
      %587 = dma.done [#allocation3], 9728
    $region21: #{tpu_custom_call.1} parent=1 // pred_fallthru
      _
    %588 = vsyncpa [#allocation3], 1

</llo_original>
